<compile_context>
chip_gen: v6e
topology: v6e:2x2x1
jax: 0.10.0
libtpu: 0.0.40
codegen_flags: <defaults>
</compile_context>

<pallas_src>
import jax
import jax.numpy as jnp
from jax.experimental import pallas as pl
from jax.experimental.pallas import tpu as pltpu

INPUT_DIM = 29
HIDDEN_DIM = 16
OUTPUT_DIM = 1


def _round_up(n, m):
    return ((n + m - 1) // m) * m


def _pick_tile(batch, batch_tile, min_steps):
    """Pick a lane-aligned (multiple-of-128) batch tile.

    - Never exceeds `batch_tile` (default 4096; a (29, 4096) f32 x-tile is
      ~0.45 MiB, <1 MiB double-buffered -- far below VMEM limits on
      v5e/v6e/v7x, so no vmem_limit_bytes override is needed).
    - Never exceeds the lane-padded batch (no pointless padding on small B).
    - For large batches, shrinks so the grid has >= `min_steps` steps (keeps
      both v7x TensorCores fed with >= 2 steps each, and gives v5e/v6e some
      DMA/compute overlap), but only when that still leaves >= 512-row tiles.
      Small batches run as a single step instead of being split into
      per-grid-step-overhead-dominated slivers.
    """
    tile = min(int(batch_tile), _round_up(batch, 128))
    per_step = _round_up(pl.cdiv(batch, min_steps), 128)
    if per_step >= 512:
        tile = min(tile, per_step)
    return max(int(tile), 128)


def resnet_kernel(
    xt_ref,        # (INPUT_DIM, tile)  lane-dense transposed input
    w1_ref,        # (16, 29)  fc1 weight, PyTorch (out, in) layout
    wres_ref,      # (64, 16)  four stacked (out, in) residual weights
    w2_ref,        # (1, 16)   fc2 weight, PyTorch (out, in) layout
    bias_ref,      # (16, 8)   packed bias columns [b1,b1a,b1b,b2a,b2b,b2,0,0]
    o_ref,         # (1, tile) lane-dense output
):
    H = HIDDEN_DIM
    xt = xt_ref[...]                                             # (29, T)
    b = bias_ref[...]
    b1, b1a, b1b = b[:, 0:1], b[:, 1:2], b[:, 2:3]               # (16, 1)
    b2a, b2b = b[:, 3:4], b[:, 4:5]                              # (16, 1)
    b2 = b[0:1, 5:6]                                             # (1, 1)

    # fc1 + ReLU:  h_t = W1 @ x_t + b1            -> (16, T) lane-dense
    h = jnp.dot(w1_ref[...], xt, preferred_element_type=jnp.float32) + b1
    h = jnp.maximum(h, 0.0)

    # residual block 1: Linear -> ReLU -> Linear, += shortcut, ReLU
    r = jnp.dot(wres_ref[0:H, :], h, preferred_element_type=jnp.float32) + b1a
    r = jnp.maximum(r, 0.0)
    r = jnp.dot(wres_ref[H:2 * H, :], r, preferred_element_type=jnp.float32) + b1b
    h = jnp.maximum(h + r, 0.0)

    # residual block 2
    r = jnp.dot(wres_ref[2 * H:3 * H, :], h, preferred_element_type=jnp.float32) + b2a
    r = jnp.maximum(r, 0.0)
    r = jnp.dot(wres_ref[3 * H:4 * H, :], r, preferred_element_type=jnp.float32) + b2b
    h = jnp.maximum(h + r, 0.0)                                  # (16, T)

    # fc2 (already lane-dense in transposed space):  y = W2 @ h_t + b2
    y = jnp.dot(w2_ref[...], h, preferred_element_type=jnp.float32) + b2  # (1, T)

    # Numerically stable sigmoid (exp goes to the EUP; no inf intermediates).
    e = jnp.exp(-jnp.abs(y))
    o_ref[...] = jnp.where(y >= 0.0, 1.0, e) / (1.0 + e)


def resnet_forward_t(x_t, params, *, batch_tile=4096, min_steps=4):
    """Transposed entry point: x_t is (INPUT_DIM, B) f32.  Returns (B, 1) f32.

    This is the preferred path -- producers that can emit x already
    transposed avoid the extra wrapper-side transpose pass over x.
    """
    F, B = x_t.shape
    assert F == INPUT_DIM, f"expected {INPUT_DIM} features, got {F}"

    tile = _pick_tile(B, batch_tile, min_steps)
    Bp = _round_up(B, tile)
    if Bp != B:
        x_t = jnp.pad(x_t, ((0, 0), (0, Bp - B)))   # zero cols; sliced off below

    grid = (Bp // tile,)

    def const_spec(shape):
        # Tiny weight/bias arrays: full-array block, resident across all steps.
        return pl.BlockSpec(shape, lambda i: (0, 0))

    out_t = pl.pallas_call(
        resnet_kernel,
        out_shape=jax.ShapeDtypeStruct((1, Bp), jnp.float32),
        grid_spec=pltpu.PrefetchScalarGridSpec(
            num_scalar_prefetch=0,
            grid=grid,
            in_specs=[
                pl.BlockSpec((INPUT_DIM, tile), lambda i: (0, i)),   # x_t tile
                const_spec(params["w1"].shape),
                const_spec(params["wres"].shape),
                const_spec(params["w2"].shape),
                const_spec(params["bias"].shape),
            ],
            out_specs=pl.BlockSpec((1, tile), lambda i: (0, i)),
        ),
        compiler_params=pltpu.CompilerParams(
            dimension_semantics=("parallel",),
        ),
    )(x_t, params["w1"], params["wres"], params["w2"], params["bias"])

    # (1, Bp) lane-dense kernel output -> (B, 1) to match the PyTorch module.
    return out_t[0, :B].reshape(B, OUTPUT_DIM)


def resnet_forward(x, params, **kwargs):
    """PyTorch-signature entry point: x is (B, INPUT_DIM).  Returns (B, 1).

    Note: the transpose below is an extra XLA pass over x; callers that can
    produce x transposed should use resnet_forward_t directly.
    """
    return resnet_forward_t(jnp.transpose(x), params, **kwargs)


def init_params(key):
    """Deterministic synthetic init matching the PyTorch module's shapes.

    All weights are kept in PyTorch's native (out, in) layout:
      w1   = fc1.weight                       (16, 29)
      wres = concat of res{1,2} weights       (64, 16)
      w2   = fc2.weight                       (1, 16)
      bias = packed columns (16, 8): [b1, b1a, b1b, b2a, b2b, b2(row0), 0, 0]
    """
    keys = jax.random.split(key, 12)

    def lin(kw, kb, fan_in, fan_out):
        bound = 1.0 / jnp.sqrt(fan_in)
        w = jax.random.uniform(kw, (fan_out, fan_in), jnp.float32, -bound, bound)
        b = jax.random.uniform(kb, (fan_out,), jnp.float32, -bound, bound)
        return w, b

    w1, b1 = lin(keys[0], keys[1], INPUT_DIM, HIDDEN_DIM)
    w1a, b1a = lin(keys[2], keys[3], HIDDEN_DIM, HIDDEN_DIM)
    w1b, b1b = lin(keys[4], keys[5], HIDDEN_DIM, HIDDEN_DIM)
    w2a, b2a = lin(keys[6], keys[7], HIDDEN_DIM, HIDDEN_DIM)
    w2b, b2b = lin(keys[8], keys[9], HIDDEN_DIM, HIDDEN_DIM)
    w2, b2 = lin(keys[10], keys[11], HIDDEN_DIM, OUTPUT_DIM)

    bias = jnp.zeros((HIDDEN_DIM, 8), jnp.float32)
    bias = bias.at[:, 0].set(b1).at[:, 1].set(b1a).at[:, 2].set(b1b)
    bias = bias.at[:, 3].set(b2a).at[:, 4].set(b2b)
    bias = bias.at[0, 5].set(b2[0])

    return {
        "w1": w1,                                               # (16, 29)
        "wres": jnp.concatenate([w1a, w1b, w2a, w2b], axis=0),  # (64, 16)
        "w2": w2,                                               # (1, 16)
        "bias": bias,                                           # (16, 8)
    }


def resnet_ref(x, p):
    """Pure-JAX reference (mirrors the PyTorch forward) for correctness."""
    relu = lambda t: jnp.maximum(t, 0.0)
    H = HIDDEN_DIM
    b = p["bias"]
    b1, b1a, b1b, b2a, b2b = (b[:, i] for i in range(5))
    b2 = b[0, 5]
    h = relu(x @ p["w1"].T + b1)
    r = relu(h @ p["wres"][0:H].T + b1a) @ p["wres"][H:2 * H].T + b1b
    h = relu(h + r)
    r = relu(h @ p["wres"][2 * H:3 * H].T + b2a) @ p["wres"][3 * H:4 * H].T + b2b
    h = relu(h + r)
    y = h @ p["w2"].T + b2
    return jax.nn.sigmoid(y)


if __name__ == "__main__":
    key = jax.random.PRNGKey(0)
    kx, kp = jax.random.split(key)

    # Non-multiple-of-128 batch: exercises the lane padding / output slicing.
    B = 300
    x = jax.random.normal(kx, (B, INPUT_DIM), jnp.float32)
    params = init_params(kp)

    out = resnet_forward(x, params)
    out = jax.block_until_ready(out)

    ref = resnet_ref(x, params)
    assert out.shape == (B, OUTPUT_DIM)
    assert jnp.allclose(out, ref, atol=1e-5, rtol=1e-5), "mismatch vs JAX reference"

    print("KERNEL_OK")
</pallas_src>

<mosaic_0001>
module attributes {stable_mosaic.version = 11 : i64} {
  func.func @resnet_kernel(%arg0: i32, %arg1: memref<29x384xf32, #tpu.memory_space<vmem>>, %arg2: memref<16x29xf32, #tpu.memory_space<vmem>>, %arg3: memref<64x16xf32, #tpu.memory_space<vmem>>, %arg4: memref<1x16xf32, #tpu.memory_space<vmem>>, %arg5: memref<16x8xf32, #tpu.memory_space<vmem>>, %arg6: memref<1x384xf32, #tpu.memory_space<vmem>>) attributes {dimension_semantics = [#tpu.dimension_semantics<parallel>], iteration_bounds = array<i64: 1>, scalar_prefetch = 0 : i64, scratch_operands = 0 : i64, tpu.core_type = #tpu.core_type<tc>, window_params = [{transform_indices = @transform_0, window_bounds = array<i64: 29, 384>}, {pipeline_mode = #tpu.pipeline_mode<synchronous>, transform_indices = @transform_1, window_bounds = array<i64: 16, 29>}, {pipeline_mode = #tpu.pipeline_mode<synchronous>, transform_indices = @transform_2, window_bounds = array<i64: 64, 16>}, {pipeline_mode = #tpu.pipeline_mode<synchronous>, transform_indices = @transform_3, window_bounds = array<i64: 1, 16>}, {pipeline_mode = #tpu.pipeline_mode<synchronous>, transform_indices = @transform_4, window_bounds = array<i64: 16, 8>}, {transform_indices = @transform_5, window_bounds = array<i64: 1, 384>}]} {
    %c0 = arith.constant 0 : index
    %c0_0 = arith.constant 0 : index
    %0 = vector.load %arg1[%c0, %c0_0] : memref<29x384xf32, #tpu.memory_space<vmem>>, vector<29x384xf32>
    %c0_1 = arith.constant 0 : index
    %c0_2 = arith.constant 0 : index
    %1 = vector.load %arg5[%c0_1, %c0_2] : memref<16x8xf32, #tpu.memory_space<vmem>>, vector<16x8xf32>
    %2 = vector.extract_strided_slice %1 {offsets = [0, 0], sizes = [16, 1], strides = [1, 1]} : vector<16x8xf32> to vector<16x1xf32>
    %3 = vector.extract_strided_slice %1 {offsets = [0, 1], sizes = [16, 1], strides = [1, 1]} : vector<16x8xf32> to vector<16x1xf32>
    %4 = vector.extract_strided_slice %1 {offsets = [0, 2], sizes = [16, 1], strides = [1, 1]} : vector<16x8xf32> to vector<16x1xf32>
    %5 = vector.extract_strided_slice %1 {offsets = [0, 3], sizes = [16, 1], strides = [1, 1]} : vector<16x8xf32> to vector<16x1xf32>
    %6 = vector.extract_strided_slice %1 {offsets = [0, 4], sizes = [16, 1], strides = [1, 1]} : vector<16x8xf32> to vector<16x1xf32>
    %7 = vector.extract_strided_slice %1 {offsets = [0, 5], sizes = [1, 1], strides = [1, 1]} : vector<16x8xf32> to vector<1x1xf32>
    %c0_3 = arith.constant 0 : index
    %c0_4 = arith.constant 0 : index
    %8 = vector.load %arg2[%c0_3, %c0_4] : memref<16x29xf32, #tpu.memory_space<vmem>>, vector<16x29xf32>
    %cst = arith.constant dense<0.000000e+00> : vector<16x384xf32>
    %9 = tpu.matmul %8, %0, %cst {dimension_numbers = #tpu.dot_dimension_numbers<[1], [0], [0], [1], [0, 0, 1, 1], [], []>} : vector<16x29xf32>, vector<29x384xf32>, vector<16x384xf32> -> vector<16x384xf32>
    %10 = vector.broadcast %2 : vector<16x1xf32> to vector<16x384xf32>
    %11 = arith.addf %9, %10 : vector<16x384xf32>
    %cst_5 = arith.constant 0.000000e+00 : f32
    %12 = vector.broadcast %cst_5 : f32 to vector<16x384xf32>
    %13 = arith.maximumf %11, %12 : vector<16x384xf32>
    %c0_6 = arith.constant 0 : index
    %c0_7 = arith.constant 0 : index
    %14 = vector.load %arg3[%c0_6, %c0_7] : memref<64x16xf32, #tpu.memory_space<vmem>>, vector<16x16xf32>
    %cst_8 = arith.constant dense<0.000000e+00> : vector<16x384xf32>
    %15 = tpu.matmul %14, %13, %cst_8 {dimension_numbers = #tpu.dot_dimension_numbers<[1], [0], [0], [1], [0, 0, 1, 1], [], []>} : vector<16x16xf32>, vector<16x384xf32>, vector<16x384xf32> -> vector<16x384xf32>
    %16 = vector.broadcast %3 : vector<16x1xf32> to vector<16x384xf32>
    %17 = arith.addf %15, %16 : vector<16x384xf32>
    %cst_9 = arith.constant 0.000000e+00 : f32
    %18 = vector.broadcast %cst_9 : f32 to vector<16x384xf32>
    %19 = arith.maximumf %17, %18 : vector<16x384xf32>
    %c16 = arith.constant 16 : index
    %c0_10 = arith.constant 0 : index
    %20 = vector.load %arg3[%c16, %c0_10] : memref<64x16xf32, #tpu.memory_space<vmem>>, vector<16x16xf32>
    %cst_11 = arith.constant dense<0.000000e+00> : vector<16x384xf32>
    %21 = tpu.matmul %20, %19, %cst_11 {dimension_numbers = #tpu.dot_dimension_numbers<[1], [0], [0], [1], [0, 0, 1, 1], [], []>} : vector<16x16xf32>, vector<16x384xf32>, vector<16x384xf32> -> vector<16x384xf32>
    %22 = vector.broadcast %4 : vector<16x1xf32> to vector<16x384xf32>
    %23 = arith.addf %21, %22 : vector<16x384xf32>
    %24 = arith.addf %13, %23 : vector<16x384xf32>
    %cst_12 = arith.constant 0.000000e+00 : f32
    %25 = vector.broadcast %cst_12 : f32 to vector<16x384xf32>
    %26 = arith.maximumf %24, %25 : vector<16x384xf32>
    %c32 = arith.constant 32 : index
    %c0_13 = arith.constant 0 : index
    %27 = vector.load %arg3[%c32, %c0_13] : memref<64x16xf32, #tpu.memory_space<vmem>>, vector<16x16xf32>
    %cst_14 = arith.constant dense<0.000000e+00> : vector<16x384xf32>
    %28 = tpu.matmul %27, %26, %cst_14 {dimension_numbers = #tpu.dot_dimension_numbers<[1], [0], [0], [1], [0, 0, 1, 1], [], []>} : vector<16x16xf32>, vector<16x384xf32>, vector<16x384xf32> -> vector<16x384xf32>
    %29 = vector.broadcast %5 : vector<16x1xf32> to vector<16x384xf32>
    %30 = arith.addf %28, %29 : vector<16x384xf32>
    %cst_15 = arith.constant 0.000000e+00 : f32
    %31 = vector.broadcast %cst_15 : f32 to vector<16x384xf32>
    %32 = arith.maximumf %30, %31 : vector<16x384xf32>
    %c48 = arith.constant 48 : index
    %c0_16 = arith.constant 0 : index
    %33 = vector.load %arg3[%c48, %c0_16] : memref<64x16xf32, #tpu.memory_space<vmem>>, vector<16x16xf32>
    %cst_17 = arith.constant dense<0.000000e+00> : vector<16x384xf32>
    %34 = tpu.matmul %33, %32, %cst_17 {dimension_numbers = #tpu.dot_dimension_numbers<[1], [0], [0], [1], [0, 0, 1, 1], [], []>} : vector<16x16xf32>, vector<16x384xf32>, vector<16x384xf32> -> vector<16x384xf32>
    %35 = vector.broadcast %6 : vector<16x1xf32> to vector<16x384xf32>
    %36 = arith.addf %34, %35 : vector<16x384xf32>
    %37 = arith.addf %26, %36 : vector<16x384xf32>
    %cst_18 = arith.constant 0.000000e+00 : f32
    %38 = vector.broadcast %cst_18 : f32 to vector<16x384xf32>
    %39 = arith.maximumf %37, %38 : vector<16x384xf32>
    %c0_19 = arith.constant 0 : index
    %c0_20 = arith.constant 0 : index
    %40 = vector.load %arg4[%c0_19, %c0_20] : memref<1x16xf32, #tpu.memory_space<vmem>>, vector<1x16xf32>
    %cst_21 = arith.constant dense<0.000000e+00> : vector<1x384xf32>
    %41 = tpu.matmul %40, %39, %cst_21 {dimension_numbers = #tpu.dot_dimension_numbers<[1], [0], [0], [1], [0, 0, 1, 1], [], []>} : vector<1x16xf32>, vector<16x384xf32>, vector<1x384xf32> -> vector<1x384xf32>
    %42 = vector.broadcast %7 : vector<1x1xf32> to vector<1x384xf32>
    %43 = arith.addf %41, %42 : vector<1x384xf32>
    %44 = math.absf %43 : vector<1x384xf32>
    %cst_22 = arith.constant 0.000000e+00 : f32
    %45 = vector.broadcast %cst_22 : f32 to vector<1x384xf32>
    %46 = arith.subf %45, %44 : vector<1x384xf32>
    %47 = math.exp %46 : vector<1x384xf32>
    %cst_23 = arith.constant 0.000000e+00 : f32
    %48 = vector.broadcast %cst_23 : f32 to vector<1x384xf32>
    %49 = arith.cmpf oge, %43, %48 : vector<1x384xf32>
    %cst_24 = arith.constant 1.000000e+00 : f32
    %50 = vector.broadcast %cst_24 : f32 to vector<1x384xf32>
    %51 = arith.select %49, %50, %47 : vector<1x384xi1>, vector<1x384xf32>
    %cst_25 = arith.constant 1.000000e+00 : f32
    %52 = vector.broadcast %cst_25 : f32 to vector<1x384xf32>
    %53 = arith.addf %52, %47 : vector<1x384xf32>
    %54 = arith.divf %51, %53 : vector<1x384xf32>
    %c0_26 = arith.constant 0 : index
    %c0_27 = arith.constant 0 : index
    %55 = vector.load %arg6[%c0_26, %c0_27] : memref<1x384xf32, #tpu.memory_space<vmem>>, vector<1x384xf32>
    tpu.vector_store %arg6[%c0_26, %c0_27], %54 {strides = array<i32>} : memref<1x384xf32, #tpu.memory_space<vmem>>, vector<1x384xf32>,
    return
  }
  func.func @transform_0(%arg0: i32) -> (i32, i32) {
    %c0_i32 = arith.constant 0 : i32
    %c0_i32_0 = arith.constant 0 : i32
    return %c0_i32, %arg0 : i32, i32
  }
  func.func @transform_1(%arg0: i32) -> (i32, i32) {
    %c0_i32 = arith.constant 0 : i32
    %c0_i32_0 = arith.constant 0 : i32
    %c0_i32_1 = arith.constant 0 : i32
    return %c0_i32, %c0_i32_0 : i32, i32
  }
  func.func @transform_2(%arg0: i32) -> (i32, i32) {
    %c0_i32 = arith.constant 0 : i32
    %c0_i32_0 = arith.constant 0 : i32
    %c0_i32_1 = arith.constant 0 : i32
    return %c0_i32, %c0_i32_0 : i32, i32
  }
  func.func @transform_3(%arg0: i32) -> (i32, i32) {
    %c0_i32 = arith.constant 0 : i32
    %c0_i32_0 = arith.constant 0 : i32
    %c0_i32_1 = arith.constant 0 : i32
    return %c0_i32, %c0_i32_0 : i32, i32
  }
  func.func @transform_4(%arg0: i32) -> (i32, i32) {
    %c0_i32 = arith.constant 0 : i32
    %c0_i32_0 = arith.constant 0 : i32
    %c0_i32_1 = arith.constant 0 : i32
    return %c0_i32, %c0_i32_0 : i32, i32
  }
  func.func @transform_5(%arg0: i32) -> (i32, i32) {
    %c0_i32 = arith.constant 0 : i32
    %c0_i32_0 = arith.constant 0 : i32
    return %c0_i32, %arg0 : i32, i32
  }
}

</mosaic_0001>

<llo_original>
// kernel: tpu_custom_call.1
$region0: #{tpu_custom_call.1}
  #allocation0 [shape = 'u32[]', space=smem, size = 0x4, offset = 0x4, fixed_abs, tag = 'smem constant byte address 0x4 - core index']
  #allocation1 [shape = 'u32[144,128]{1,0:T(1,128)}', space=vmem, size = 0x12000, scoped, tag = 'internal scratch']
  %s0 = inlined_call_operand.vmem [shape: f32[29,384], index: 0, kind: input, shape index: {}]
  %s1 = inlined_call_operand.hbm [shape: f32[16,29], index: 1, kind: input, shape index: {}]
  %s2 = inlined_call_operand.vmem [shape: f32[64,16], index: 2, kind: input, shape index: {}]
  %s3 = inlined_call_operand.vmem [shape: f32[1,16], index: 3, kind: input, shape index: {}]
  %s4 = inlined_call_operand.vmem [shape: f32[16,8], index: 4, kind: input, shape index: {}]
  %s5 = inlined_call_operand.hbm [shape: f32[1,384], index: 5, kind: output, shape index: {}]
  %s6 = sld [smem:[#allocation0]]
  $region34: #{tpu_custom_call.1} parent=0
    _
  %s8 = ssub.s32 1, %s6
  %s9 = scalar_select 0, %s8, %s6
  $region1: #{tpu_custom_call.1} parent=0
    #allocation2 [shape = 'u8[8192]{0}', space=vmem, size = 0x2000, scoped, tag = 'input window, operand 1, single buffered']
    #allocation3 [shape = 's32[1]{0}', space=sflag, size = 0x4, scoped, tag = 'scoped memory for tpu_custom_call.1']
    #allocation4 [shape = 's32[1]{0}', space=sflag, size = 0x4, scoped, tag = 'scoped memory for tpu_custom_call.1']
    #allocation5 [shape = 'u8[1536]{0}', space=vmem, size = 0x800, scoped, tag = 'output window, operand 0, single buffered']
    %10 = vsyncpa [#allocation3], 0
    %11 = vsyncpa [#allocation4], 0
    // Predicated region
    $region2: #{tpu_custom_call.1} parent=1 // pred_check
      _
    $region3: #{tpu_custom_call.1} parent=1 // pred_check_branch
      %13 = sbr.rel (0) target = $region5
    $region4: #{tpu_custom_call.1} parent=1 // pred_region
      _
    $region5: #{tpu_custom_call.1} parent=1 // pred_fallthru
      _
    // Predicated region
    $region6: #{tpu_custom_call.1} parent=1 // pred_check
      _
    $region7: #{tpu_custom_call.1} parent=1 // pred_check_branch
      %15 = sbr.rel (0) target = $region9
    $region8: #{tpu_custom_call.1} parent=1 // pred_region
      %s17 = ssub.s32 256, 256
      %18 = vsyncadd [#allocation3], %s17
      %s19 = sshll.u32 [#allocation2], 4
      %s20 = int_to_ptr.vmem [resolvable:$true] %s19
      %25 = dma.hbm_to_vmem [thread:$0]  %s1, 256, %s20, [#allocation3], 128, 128, 8
    $region9: #{tpu_custom_call.1} parent=1 // pred_fallthru
      _
    // Predicated region
    $region10: #{tpu_custom_call.1} parent=1 // pred_check
      _
    $region11: #{tpu_custom_call.1} parent=1 // pred_check_branch
      %27 = sbr.rel (0) target = $region13
    $region12: #{tpu_custom_call.1} parent=1 // pred_region
      _
    $region13: #{tpu_custom_call.1} parent=1 // pred_fallthru
      _
    // Predicated region
    $region14: #{tpu_custom_call.1} parent=1 // pred_check
      _
    $region15: #{tpu_custom_call.1} parent=1 // pred_check_branch
      %29 = sbr.rel (0) target = $region17
    $region16: #{tpu_custom_call.1} parent=1 // pred_region
      _
    $region17: #{tpu_custom_call.1} parent=1 // pred_fallthru
      _
    // Predicated region
    $region18: #{tpu_custom_call.1} parent=1 // pred_check
      _
    $region19: #{tpu_custom_call.1} parent=1 // pred_check_branch
      %31 = sbr.rel (0) target = $region21
    $region20: #{tpu_custom_call.1} parent=1 // pred_region
      _
    $region21: #{tpu_custom_call.1} parent=1 // pred_fallthru
      _
    // Predicated region
    $region22: #{tpu_custom_call.1} parent=1 // pred_check
      _
    $region23: #{tpu_custom_call.1} parent=1 // pred_check_branch
      %33 = sbr.rel (0) target = $region25
    $region24: #{tpu_custom_call.1} parent=1 // pred_region
      %34 = dma.done [#allocation3], 256
    $region25: #{tpu_custom_call.1} parent=1 // pred_fallthru
      _
    %v35 = vld [vmem:[%s0] sm:$0xff]
    %v36 = vld [vmem:[%s0 + $0x8] sm:$0xff]
    %v37 = vld [vmem:[%s0 + $0x10] sm:$0xff]
    %v38 = vld [vmem:[%s0 + $0x18] sm:$0xff]
    %v39 = vld [vmem:[%s0 + $0x20] sm:$0xff]
    %v40 = vld [vmem:[%s0 + $0x28] sm:$0xff]
    %v41 = vld [vmem:[%s0 + $0x30] sm:$0xff]
    %v42 = vld [vmem:[%s0 + $0x38] sm:$0xff]
    %v43 = vld [vmem:[%s0 + $0x40] sm:$0xff]
    %v44 = vld [vmem:[%s0 + $0x48] sm:$0x1f]
    %v45 = vld [vmem:[%s0 + $0x50] sm:$0x1f]
    %v46 = vld [vmem:[%s0 + $0x58] sm:$0x1f]
    %v47 = vld [vmem:[%s4] sm:$0xff]
    %v48 = vld [vmem:[%s4 + $0x8] sm:$0xff]
    %v49 = vld [vmem:[#allocation2] sm:$0xff]
    %v50 = vld [vmem:[#allocation2 + $0x8] sm:$0xff]
    %52 = vset.pattern.permute.xlu0 0
    %53 = vperm.xlu0 %52, %v47
    %v54 = vpop.permute.xlu0 %53
    %57 = vset.pattern.permute.xlu0 0
    %58 = vperm.xlu0 %57, %v48
    %v59 = vpop.permute.xlu0 %58
    %vm61 = vcmask 236544
    %v63 = vsel %vm61, %v49, 0
    %v66 = vsel %vm61, %v50, 0
    %vm68 = vcmask 1044480
    %v70 = vsel %vm68, %v44, 0
    %v73 = vsel %vm68, %v45, 0
    %v76 = vsel %vm68, %v46, 0
    %78 = vmatprep.subr.mxu0 0.0
    %79 = vmatpush1.msra.mxu0 0.0
    %80 = vmatprep.subr.mxu0 0.0
    %81 = vmatpush1.msra.mxu0 0.0
    %82 = vmatprep.subr.mxu0 0.0
    %83 = vmatpush1.msra.mxu0 0.0
    %84 = vmatprep.subr.mxu0 0.0
    %85 = vmatpush1.msra.mxu0 0.0
    %86 = vmatprep.subr.mxu0 0.0
    %87 = vmatpush1.msra.mxu0 0.0
    %88 = vmatprep.subr.mxu0 0.0
    %89 = vmatpush1.msra.mxu0 0.0
    %90 = vmatprep.subr.mxu0 0.0
    %91 = vmatpush1.msra.mxu0 0.0
    %92 = vmatprep.subr.mxu0 0.0
    %93 = vmatpush1.msra.mxu0 0.0
    %94 = vmatprep.subr.mxu0 0.0
    %95 = vmatpush1.msra.mxu0 0.0
    %96 = vmatprep.subr.mxu0 0.0
    %97 = vmatpush1.msra.mxu0 0.0
    %98 = vmatprep.subr.mxu0 0.0
    %99 = vmatpush1.msra.mxu0 0.0
    %100 = vmatprep.subr.mxu0 0.0
    %101 = vmatpush1.msra.mxu0 0.0
    %102 = vmatprep.subr.mxu0 %v73
    %103 = vmatpush1.msra.mxu0 %v70
    %104 = vmatprep.subr.mxu0 %v42
    %105 = vmatpush1.msra.mxu0 %v41
    %106 = vmatprep.subr.mxu0 %v39
    %107 = vmatpush1.msra.mxu0 %v38
    %108 = vmatprep.subr.mxu0 %v36
    %109 = vmatpush1.msra.mxu0 %v35
    %110 = vmatprep.subr.mxu0 0.0
    %111 = vmatpush2.msra.mxu0 0.0
    %112 = vmatprep.subr.mxu0 0.0
    %113 = vmatpush2.msra.mxu0 0.0
    %114 = vmatprep.subr.mxu0 0.0
    %115 = vmatpush2.msra.mxu0 0.0
    %116 = vmatprep.subr.mxu0 0.0
    %117 = vmatpush2.msra.mxu0 0.0
    %118 = vmatprep.subr.mxu0 0.0
    %119 = vmatpush2.msra.mxu0 0.0
    %120 = vmatprep.subr.mxu0 0.0
    %121 = vmatpush2.msra.mxu0 0.0
    %122 = vmatprep.subr.mxu0 0.0
    %123 = vmatpush2.msra.mxu0 0.0
    %124 = vmatprep.subr.mxu0 0.0
    %125 = vmatpush2.msra.mxu0 0.0
    %126 = vmatprep.subr.mxu0 0.0
    %127 = vmatpush2.msra.mxu0 0.0
    %128 = vmatprep.subr.mxu0 0.0
    %129 = vmatpush2.msra.mxu0 0.0
    %130 = vmatprep.subr.mxu0 0.0
    %131 = vmatpush2.msra.mxu0 0.0
    %132 = vmatprep.subr.mxu0 0.0
    %133 = vmatpush2.msra.mxu0 0.0
    %134 = vmatprep.subr.mxu0 0.0
    %135 = vmatpush2.msra.mxu0 0.0
    %136 = vmatprep.subr.mxu0 0.0
    %137 = vmatpush2.msra.mxu0 0.0
    %138 = vmatprep.subr.mxu0 0.0
    %139 = vmatpush2.msra.mxu0 0.0
    %140 = vmatprep.subr.mxu0 0.0
    %141 = vmatpush2.msra.mxu0 0.0
    %142 = vmatprep.mubr.f32.mxu0 0.0
    %143 = vmatmul.mubr.f32.gmra.mxu0 %v63
    %v144 = vpop.f32.mrf.mxu0
    %v145 = vadd.f32 %v54, %v144
    %v146 = vpop.f32.mrf.mxu0
    %v147 = vadd.f32 %v54, %v146
    %148 = vmatprep.mubr.f32.mxu0 0.0
    %149 = vmatmul.mubr.f32.gmra.mxu0 %v66
    %v150 = vpop.f32.mrf.mxu0
    %v151 = vadd.f32 %v59, %v150
    %v152 = vpop.f32.mrf.mxu0
    %v153 = vadd.f32 %v59, %v152
    %154 = vdwg.mxu0
    %155 = vmatprep.subr.mxu0 0.0
    %156 = vmatpush1.msra.mxu0 0.0
    %157 = vmatprep.subr.mxu0 0.0
    %158 = vmatpush1.msra.mxu0 0.0
    %159 = vmatprep.subr.mxu0 0.0
    %160 = vmatpush1.msra.mxu0 0.0
    %161 = vmatprep.subr.mxu0 0.0
    %162 = vmatpush1.msra.mxu0 0.0
    %163 = vmatprep.subr.mxu0 0.0
    %164 = vmatpush1.msra.mxu0 0.0
    %165 = vmatprep.subr.mxu0 0.0
    %166 = vmatpush1.msra.mxu0 0.0
    %167 = vmatprep.subr.mxu0 0.0
    %168 = vmatpush1.msra.mxu0 0.0
    %169 = vmatprep.subr.mxu0 0.0
    %170 = vmatpush1.msra.mxu0 0.0
    %171 = vmatprep.subr.mxu0 0.0
    %172 = vmatpush1.msra.mxu0 0.0
    %173 = vmatprep.subr.mxu0 0.0
    %174 = vmatpush1.msra.mxu0 0.0
    %175 = vmatprep.subr.mxu0 0.0
    %176 = vmatpush1.msra.mxu0 0.0
    %177 = vmatprep.subr.mxu0 0.0
    %178 = vmatpush1.msra.mxu0 0.0
    %179 = vmatprep.subr.mxu0 0.0
    %180 = vmatpush1.msra.mxu0 %v76
    %181 = vmatprep.subr.mxu0 0.0
    %182 = vmatpush1.msra.mxu0 %v43
    %183 = vmatprep.subr.mxu0 0.0
    %184 = vmatpush1.msra.mxu0 %v40
    %185 = vmatprep.subr.mxu0 0.0
    %186 = vmatpush1.msra.mxu0 %v37
    %187 = vmatprep.subr.mxu0 0.0
    %188 = vmatpush2.msra.mxu0 0.0
    %189 = vmatprep.subr.mxu0 0.0
    %190 = vmatpush2.msra.mxu0 0.0
    %191 = vmatprep.subr.mxu0 0.0
    %192 = vmatpush2.msra.mxu0 0.0
    %193 = vmatprep.subr.mxu0 0.0
    %194 = vmatpush2.msra.mxu0 0.0
    %195 = vmatprep.subr.mxu0 0.0
    %196 = vmatpush2.msra.mxu0 0.0
    %197 = vmatprep.subr.mxu0 0.0
    %198 = vmatpush2.msra.mxu0 0.0
    %199 = vmatprep.subr.mxu0 0.0
    %200 = vmatpush2.msra.mxu0 0.0
    %201 = vmatprep.subr.mxu0 0.0
    %202 = vmatpush2.msra.mxu0 0.0
    %203 = vmatprep.subr.mxu0 0.0
    %204 = vmatpush2.msra.mxu0 0.0
    %205 = vmatprep.subr.mxu0 0.0
    %206 = vmatpush2.msra.mxu0 0.0
    %207 = vmatprep.subr.mxu0 0.0
    %208 = vmatpush2.msra.mxu0 0.0
    %209 = vmatprep.subr.mxu0 0.0
    %210 = vmatpush2.msra.mxu0 0.0
    %211 = vmatprep.subr.mxu0 0.0
    %212 = vmatpush2.msra.mxu0 0.0
    %213 = vmatprep.subr.mxu0 0.0
    %214 = vmatpush2.msra.mxu0 0.0
    %215 = vmatprep.subr.mxu0 0.0
    %216 = vmatpush2.msra.mxu0 0.0
    %217 = vmatprep.subr.mxu0 0.0
    %218 = vmatpush2.msra.mxu0 0.0
    %219 = vmatprep.mubr.f32.mxu0 0.0
    %220 = vmatmul.mubr.f32.gmra.mxu0 %v63
    %v221 = vpop.f32.mrf.mxu0
    %v222 = vadd.f32 %v54, %v221
    %v223 = vpop.f32.mrf.mxu0
    %224 = vmatprep.mubr.f32.mxu0 0.0
    %225 = vmatmul.mubr.f32.gmra.mxu0 %v66
    %v226 = vpop.f32.mrf.mxu0
    %v227 = vadd.f32 %v59, %v226
    %v228 = vpop.f32.mrf.mxu0
    %229 = vdwg.mxu0
    %v230 = vmax.f32 %v145, 0.0
    %v231 = vmax.f32 %v147, 0.0
    %v232 = vmax.f32 %v222, 0.0
    %v233 = vmax.f32 %v151, 0.0
    %v234 = vmax.f32 %v153, 0.0
    %v235 = vmax.f32 %v227, 0.0
    %v236 = vld [vmem:[%s2] sm:$0xff]
    %v237 = vld [vmem:[%s2 + $0x8] sm:$0xff]
    %238 = vset.pattern.permute.xlu0 1
    %239 = vperm.xlu0 %238, %v47
    %v240 = vpop.permute.xlu0 %239
    %242 = vset.pattern.permute.xlu0 1
    %243 = vperm.xlu0 %242, %v48
    %v244 = vpop.permute.xlu0 %243
    %vm246 = vcmask 130048
    %v248 = vsel %vm246, %v236, 0
    %v251 = vsel %vm246, %v237, 0
    %253 = vmatprep.subr.mxu0 0.0
    %254 = vmatpush1.msra.mxu0 0.0
    %255 = vmatprep.subr.mxu0 0.0
    %256 = vmatpush1.msra.mxu0 0.0
    %257 = vmatprep.subr.mxu0 0.0
    %258 = vmatpush1.msra.mxu0 0.0
    %259 = vmatprep.subr.mxu0 0.0
    %260 = vmatpush1.msra.mxu0 0.0
    %261 = vmatprep.subr.mxu0 0.0
    %262 = vmatpush1.msra.mxu0 0.0
    %263 = vmatprep.subr.mxu0 0.0
    %264 = vmatpush1.msra.mxu0 0.0
    %265 = vmatprep.subr.mxu0 0.0
    %266 = vmatpush1.msra.mxu0 0.0
    %267 = vmatprep.subr.mxu0 0.0
    %268 = vmatpush1.msra.mxu0 0.0
    %269 = vmatprep.subr.mxu0 0.0
    %270 = vmatpush1.msra.mxu0 0.0
    %271 = vmatprep.subr.mxu0 0.0
    %272 = vmatpush1.msra.mxu0 0.0
    %273 = vmatprep.subr.mxu0 0.0
    %274 = vmatpush1.msra.mxu0 0.0
    %275 = vmatprep.subr.mxu0 0.0
    %276 = vmatpush1.msra.mxu0 0.0
    %277 = vmatprep.subr.mxu0 0.0
    %278 = vmatpush1.msra.mxu0 0.0
    %279 = vmatprep.subr.mxu0 0.0
    %280 = vmatpush1.msra.mxu0 0.0
    %281 = vmatprep.subr.mxu0 %v234
    %282 = vmatpush1.msra.mxu0 %v233
    %283 = vmatprep.subr.mxu0 %v231
    %284 = vmatpush1.msra.mxu0 %v230
    %285 = vmatprep.subr.mxu0 0.0
    %286 = vmatpush2.msra.mxu0 0.0
    %287 = vmatprep.subr.mxu0 0.0
    %288 = vmatpush2.msra.mxu0 0.0
    %289 = vmatprep.subr.mxu0 0.0
    %290 = vmatpush2.msra.mxu0 0.0
    %291 = vmatprep.subr.mxu0 0.0
    %292 = vmatpush2.msra.mxu0 0.0
    %293 = vmatprep.subr.mxu0 0.0
    %294 = vmatpush2.msra.mxu0 0.0
    %295 = vmatprep.subr.mxu0 0.0
    %296 = vmatpush2.msra.mxu0 0.0
    %297 = vmatprep.subr.mxu0 0.0
    %298 = vmatpush2.msra.mxu0 0.0
    %299 = vmatprep.subr.mxu0 0.0
    %300 = vmatpush2.msra.mxu0 0.0
    %301 = vmatprep.subr.mxu0 0.0
    %302 = vmatpush2.msra.mxu0 0.0
    %303 = vmatprep.subr.mxu0 0.0
    %304 = vmatpush2.msra.mxu0 0.0
    %305 = vmatprep.subr.mxu0 0.0
    %306 = vmatpush2.msra.mxu0 0.0
    %307 = vmatprep.subr.mxu0 0.0
    %308 = vmatpush2.msra.mxu0 0.0
    %309 = vmatprep.subr.mxu0 0.0
    %310 = vmatpush2.msra.mxu0 0.0
    %311 = vmatprep.subr.mxu0 0.0
    %312 = vmatpush2.msra.mxu0 0.0
    %313 = vmatprep.subr.mxu0 0.0
    %314 = vmatpush2.msra.mxu0 0.0
    %315 = vmatprep.subr.mxu0 0.0
    %316 = vmatpush2.msra.mxu0 0.0
    %317 = vmatprep.mubr.f32.mxu0 0.0
    %318 = vmatmul.mubr.f32.gmra.mxu0 %v248
    %v319 = vpop.f32.mrf.mxu0
    %v320 = vadd.f32 %v240, %v319
    %v321 = vpop.f32.mrf.mxu0
    %v322 = vadd.f32 %v240, %v321
    %323 = vmatprep.mubr.f32.mxu0 0.0
    %324 = vmatmul.mubr.f32.gmra.mxu0 %v251
    %v325 = vpop.f32.mrf.mxu0
    %v326 = vadd.f32 %v244, %v325
    %v327 = vpop.f32.mrf.mxu0
    %v328 = vadd.f32 %v244, %v327
    %329 = vdwg.mxu0
    %330 = vmatprep.subr.mxu0 0.0
    %331 = vmatpush1.msra.mxu0 0.0
    %332 = vmatprep.subr.mxu0 0.0
    %333 = vmatpush1.msra.mxu0 0.0
    %334 = vmatprep.subr.mxu0 0.0
    %335 = vmatpush1.msra.mxu0 0.0
    %336 = vmatprep.subr.mxu0 0.0
    %337 = vmatpush1.msra.mxu0 0.0
    %338 = vmatprep.subr.mxu0 0.0
    %339 = vmatpush1.msra.mxu0 0.0
    %340 = vmatprep.subr.mxu0 0.0
    %341 = vmatpush1.msra.mxu0 0.0
    %342 = vmatprep.subr.mxu0 0.0
    %343 = vmatpush1.msra.mxu0 0.0
    %344 = vmatprep.subr.mxu0 0.0
    %345 = vmatpush1.msra.mxu0 0.0
    %346 = vmatprep.subr.mxu0 0.0
    %347 = vmatpush1.msra.mxu0 0.0
    %348 = vmatprep.subr.mxu0 0.0
    %349 = vmatpush1.msra.mxu0 0.0
    %350 = vmatprep.subr.mxu0 0.0
    %351 = vmatpush1.msra.mxu0 0.0
    %352 = vmatprep.subr.mxu0 0.0
    %353 = vmatpush1.msra.mxu0 0.0
    %354 = vmatprep.subr.mxu0 0.0
    %355 = vmatpush1.msra.mxu0 0.0
    %356 = vmatprep.subr.mxu0 0.0
    %357 = vmatpush1.msra.mxu0 0.0
    %358 = vmatprep.subr.mxu0 0.0
    %359 = vmatpush1.msra.mxu0 %v235
    %360 = vmatprep.subr.mxu0 0.0
    %361 = vmatpush1.msra.mxu0 %v232
    %362 = vmatprep.subr.mxu0 0.0
    %363 = vmatpush2.msra.mxu0 0.0
    %364 = vmatprep.subr.mxu0 0.0
    %365 = vmatpush2.msra.mxu0 0.0
    %366 = vmatprep.subr.mxu0 0.0
    %367 = vmatpush2.msra.mxu0 0.0
    %368 = vmatprep.subr.mxu0 0.0
    %369 = vmatpush2.msra.mxu0 0.0
    %370 = vmatprep.subr.mxu0 0.0
    %371 = vmatpush2.msra.mxu0 0.0
    %372 = vmatprep.subr.mxu0 0.0
    %373 = vmatpush2.msra.mxu0 0.0
    %374 = vmatprep.subr.mxu0 0.0
    %375 = vmatpush2.msra.mxu0 0.0
    %376 = vmatprep.subr.mxu0 0.0
    %377 = vmatpush2.msra.mxu0 0.0
    %378 = vmatprep.subr.mxu0 0.0
    %379 = vmatpush2.msra.mxu0 0.0
    %380 = vmatprep.subr.mxu0 0.0
    %381 = vmatpush2.msra.mxu0 0.0
    %382 = vmatprep.subr.mxu0 0.0
    %383 = vmatpush2.msra.mxu0 0.0
    %384 = vmatprep.subr.mxu0 0.0
    %385 = vmatpush2.msra.mxu0 0.0
    %386 = vmatprep.subr.mxu0 0.0
    %387 = vmatpush2.msra.mxu0 0.0
    %388 = vmatprep.subr.mxu0 0.0
    %389 = vmatpush2.msra.mxu0 0.0
    %390 = vmatprep.subr.mxu0 0.0
    %391 = vmatpush2.msra.mxu0 0.0
    %392 = vmatprep.subr.mxu0 0.0
    %393 = vmatpush2.msra.mxu0 0.0
    %394 = vmatprep.mubr.f32.mxu0 0.0
    %395 = vmatmul.mubr.f32.gmra.mxu0 %v248
    %v396 = vpop.f32.mrf.mxu0
    %v397 = vadd.f32 %v240, %v396
    %v398 = vpop.f32.mrf.mxu0
    %399 = vmatprep.mubr.f32.mxu0 0.0
    %400 = vmatmul.mubr.f32.gmra.mxu0 %v251
    %v401 = vpop.f32.mrf.mxu0
    %v402 = vadd.f32 %v244, %v401
    %v403 = vpop.f32.mrf.mxu0
    %404 = vdwg.mxu0
    %v405 = vmax.f32 %v320, 0.0
    %v406 = vmax.f32 %v322, 0.0
    %v407 = vmax.f32 %v397, 0.0
    %v408 = vmax.f32 %v326, 0.0
    %v409 = vmax.f32 %v328, 0.0
    %v410 = vmax.f32 %v402, 0.0
    %v411 = vld [vmem:[%s2 + $0x10] sm:$0xff]
    %v412 = vld [vmem:[%s2 + $0x18] sm:$0xff]
    %413 = vset.pattern.permute.xlu0 2
    %414 = vperm.xlu0 %413, %v47
    %v415 = vpop.permute.xlu0 %414
    %417 = vset.pattern.permute.xlu0 2
    %418 = vperm.xlu0 %417, %v48
    %v419 = vpop.permute.xlu0 %418
    %v422 = vsel %vm246, %v411, 0
    %v425 = vsel %vm246, %v412, 0
    %427 = vmatprep.subr.mxu0 0.0
    %428 = vmatpush1.msra.mxu0 0.0
    %429 = vmatprep.subr.mxu0 0.0
    %430 = vmatpush1.msra.mxu0 0.0
    %431 = vmatprep.subr.mxu0 0.0
    %432 = vmatpush1.msra.mxu0 0.0
    %433 = vmatprep.subr.mxu0 0.0
    %434 = vmatpush1.msra.mxu0 0.0
    %435 = vmatprep.subr.mxu0 0.0
    %436 = vmatpush1.msra.mxu0 0.0
    %437 = vmatprep.subr.mxu0 0.0
    %438 = vmatpush1.msra.mxu0 0.0
    %439 = vmatprep.subr.mxu0 0.0
    %440 = vmatpush1.msra.mxu0 0.0
    %441 = vmatprep.subr.mxu0 0.0
    %442 = vmatpush1.msra.mxu0 0.0
    %443 = vmatprep.subr.mxu0 0.0
    %444 = vmatpush1.msra.mxu0 0.0
    %445 = vmatprep.subr.mxu0 0.0
    %446 = vmatpush1.msra.mxu0 0.0
    %447 = vmatprep.subr.mxu0 0.0
    %448 = vmatpush1.msra.mxu0 0.0
    %449 = vmatprep.subr.mxu0 0.0
    %450 = vmatpush1.msra.mxu0 0.0
    %451 = vmatprep.subr.mxu0 0.0
    %452 = vmatpush1.msra.mxu0 0.0
    %453 = vmatprep.subr.mxu0 0.0
    %454 = vmatpush1.msra.mxu0 0.0
    %455 = vmatprep.subr.mxu0 %v409
    %456 = vmatpush1.msra.mxu0 %v408
    %457 = vmatprep.subr.mxu0 %v406
    %458 = vmatpush1.msra.mxu0 %v405
    %459 = vmatprep.subr.mxu0 0.0
    %460 = vmatpush2.msra.mxu0 0.0
    %461 = vmatprep.subr.mxu0 0.0
    %462 = vmatpush2.msra.mxu0 0.0
    %463 = vmatprep.subr.mxu0 0.0
    %464 = vmatpush2.msra.mxu0 0.0
    %465 = vmatprep.subr.mxu0 0.0
    %466 = vmatpush2.msra.mxu0 0.0
    %467 = vmatprep.subr.mxu0 0.0
    %468 = vmatpush2.msra.mxu0 0.0
    %469 = vmatprep.subr.mxu0 0.0
    %470 = vmatpush2.msra.mxu0 0.0
    %471 = vmatprep.subr.mxu0 0.0
    %472 = vmatpush2.msra.mxu0 0.0
    %473 = vmatprep.subr.mxu0 0.0
    %474 = vmatpush2.msra.mxu0 0.0
    %475 = vmatprep.subr.mxu0 0.0
    %476 = vmatpush2.msra.mxu0 0.0
    %477 = vmatprep.subr.mxu0 0.0
    %478 = vmatpush2.msra.mxu0 0.0
    %479 = vmatprep.subr.mxu0 0.0
    %480 = vmatpush2.msra.mxu0 0.0
    %481 = vmatprep.subr.mxu0 0.0
    %482 = vmatpush2.msra.mxu0 0.0
    %483 = vmatprep.subr.mxu0 0.0
    %484 = vmatpush2.msra.mxu0 0.0
    %485 = vmatprep.subr.mxu0 0.0
    %486 = vmatpush2.msra.mxu0 0.0
    %487 = vmatprep.subr.mxu0 0.0
    %488 = vmatpush2.msra.mxu0 0.0
    %489 = vmatprep.subr.mxu0 0.0
    %490 = vmatpush2.msra.mxu0 0.0
    %491 = vmatprep.mubr.f32.mxu0 0.0
    %492 = vmatmul.mubr.f32.gmra.mxu0 %v422
    %v493 = vpop.f32.mrf.mxu0
    %v494 = vadd.f32 %v415, %v493
    %v495 = vpop.f32.mrf.mxu0
    %v496 = vadd.f32 %v415, %v495
    %497 = vmatprep.mubr.f32.mxu0 0.0
    %498 = vmatmul.mubr.f32.gmra.mxu0 %v425
    %v499 = vpop.f32.mrf.mxu0
    %v500 = vadd.f32 %v419, %v499
    %v501 = vpop.f32.mrf.mxu0
    %v502 = vadd.f32 %v419, %v501
    %503 = vdwg.mxu0
    %504 = vmatprep.subr.mxu0 0.0
    %505 = vmatpush1.msra.mxu0 0.0
    %506 = vmatprep.subr.mxu0 0.0
    %507 = vmatpush1.msra.mxu0 0.0
    %508 = vmatprep.subr.mxu0 0.0
    %509 = vmatpush1.msra.mxu0 0.0
    %510 = vmatprep.subr.mxu0 0.0
    %511 = vmatpush1.msra.mxu0 0.0
    %512 = vmatprep.subr.mxu0 0.0
    %513 = vmatpush1.msra.mxu0 0.0
    %514 = vmatprep.subr.mxu0 0.0
    %515 = vmatpush1.msra.mxu0 0.0
    %516 = vmatprep.subr.mxu0 0.0
    %517 = vmatpush1.msra.mxu0 0.0
    %518 = vmatprep.subr.mxu0 0.0
    %519 = vmatpush1.msra.mxu0 0.0
    %520 = vmatprep.subr.mxu0 0.0
    %521 = vmatpush1.msra.mxu0 0.0
    %522 = vmatprep.subr.mxu0 0.0
    %523 = vmatpush1.msra.mxu0 0.0
    %524 = vmatprep.subr.mxu0 0.0
    %525 = vmatpush1.msra.mxu0 0.0
    %526 = vmatprep.subr.mxu0 0.0
    %527 = vmatpush1.msra.mxu0 0.0
    %528 = vmatprep.subr.mxu0 0.0
    %529 = vmatpush1.msra.mxu0 0.0
    %530 = vmatprep.subr.mxu0 0.0
    %531 = vmatpush1.msra.mxu0 0.0
    %532 = vmatprep.subr.mxu0 0.0
    %533 = vmatpush1.msra.mxu0 %v410
    %534 = vmatprep.subr.mxu0 0.0
    %535 = vmatpush1.msra.mxu0 %v407
    %536 = vmatprep.subr.mxu0 0.0
    %537 = vmatpush2.msra.mxu0 0.0
    %538 = vmatprep.subr.mxu0 0.0
    %539 = vmatpush2.msra.mxu0 0.0
    %540 = vmatprep.subr.mxu0 0.0
    %541 = vmatpush2.msra.mxu0 0.0
    %542 = vmatprep.subr.mxu0 0.0
    %543 = vmatpush2.msra.mxu0 0.0
    %544 = vmatprep.subr.mxu0 0.0
    %545 = vmatpush2.msra.mxu0 0.0
    %546 = vmatprep.subr.mxu0 0.0
    %547 = vmatpush2.msra.mxu0 0.0
    %548 = vmatprep.subr.mxu0 0.0
    %549 = vmatpush2.msra.mxu0 0.0
    %550 = vmatprep.subr.mxu0 0.0
    %551 = vmatpush2.msra.mxu0 0.0
    %552 = vmatprep.subr.mxu0 0.0
    %553 = vmatpush2.msra.mxu0 0.0
    %554 = vmatprep.subr.mxu0 0.0
    %555 = vmatpush2.msra.mxu0 0.0
    %556 = vmatprep.subr.mxu0 0.0
    %557 = vmatpush2.msra.mxu0 0.0
    %558 = vmatprep.subr.mxu0 0.0
    %559 = vmatpush2.msra.mxu0 0.0
    %560 = vmatprep.subr.mxu0 0.0
    %561 = vmatpush2.msra.mxu0 0.0
    %562 = vmatprep.subr.mxu0 0.0
    %563 = vmatpush2.msra.mxu0 0.0
    %564 = vmatprep.subr.mxu0 0.0
    %565 = vmatpush2.msra.mxu0 0.0
    %566 = vmatprep.subr.mxu0 0.0
    %567 = vmatpush2.msra.mxu0 0.0
    %568 = vmatprep.mubr.f32.mxu0 0.0
    %569 = vmatmul.mubr.f32.gmra.mxu0 %v422
    %v570 = vpop.f32.mrf.mxu0
    %v571 = vadd.f32 %v415, %v570
    %v572 = vpop.f32.mrf.mxu0
    %573 = vmatprep.mubr.f32.mxu0 0.0
    %574 = vmatmul.mubr.f32.gmra.mxu0 %v425
    %v575 = vpop.f32.mrf.mxu0
    %v576 = vadd.f32 %v419, %v575
    %v577 = vpop.f32.mrf.mxu0
    %578 = vdwg.mxu0
    %v579 = vadd.f32 %v230, %v494
    %v580 = vadd.f32 %v231, %v496
    %v581 = vadd.f32 %v232, %v571
    %v582 = vadd.f32 %v233, %v500
    %v583 = vadd.f32 %v234, %v502
    %v584 = vadd.f32 %v235, %v576
    %v585 = vmax.f32 %v579, 0.0
    %v586 = vmax.f32 %v580, 0.0
    %v587 = vmax.f32 %v581, 0.0
    %v588 = vmax.f32 %v582, 0.0
    %v589 = vmax.f32 %v583, 0.0
    %v590 = vmax.f32 %v584, 0.0
    %v591 = vld [vmem:[%s2 + $0x20] sm:$0xff]
    %v592 = vld [vmem:[%s2 + $0x28] sm:$0xff]
    %593 = vset.pattern.permute.xlu0 3
    %594 = vperm.xlu0 %593, %v47
    %v595 = vpop.permute.xlu0 %594
    %597 = vset.pattern.permute.xlu0 3
    %598 = vperm.xlu0 %597, %v48
    %v599 = vpop.permute.xlu0 %598
    %v602 = vsel %vm246, %v591, 0
    %v605 = vsel %vm246, %v592, 0
    %607 = vmatprep.subr.mxu0 0.0
    %608 = vmatpush1.msra.mxu0 0.0
    %609 = vmatprep.subr.mxu0 0.0
    %610 = vmatpush1.msra.mxu0 0.0
    %611 = vmatprep.subr.mxu0 0.0
    %612 = vmatpush1.msra.mxu0 0.0
    %613 = vmatprep.subr.mxu0 0.0
    %614 = vmatpush1.msra.mxu0 0.0
    %615 = vmatprep.subr.mxu0 0.0
    %616 = vmatpush1.msra.mxu0 0.0
    %617 = vmatprep.subr.mxu0 0.0
    %618 = vmatpush1.msra.mxu0 0.0
    %619 = vmatprep.subr.mxu0 0.0
    %620 = vmatpush1.msra.mxu0 0.0
    %621 = vmatprep.subr.mxu0 0.0
    %622 = vmatpush1.msra.mxu0 0.0
    %623 = vmatprep.subr.mxu0 0.0
    %624 = vmatpush1.msra.mxu0 0.0
    %625 = vmatprep.subr.mxu0 0.0
    %626 = vmatpush1.msra.mxu0 0.0
    %627 = vmatprep.subr.mxu0 0.0
    %628 = vmatpush1.msra.mxu0 0.0
    %629 = vmatprep.subr.mxu0 0.0
    %630 = vmatpush1.msra.mxu0 0.0
    %631 = vmatprep.subr.mxu0 0.0
    %632 = vmatpush1.msra.mxu0 0.0
    %633 = vmatprep.subr.mxu0 0.0
    %634 = vmatpush1.msra.mxu0 0.0
    %635 = vmatprep.subr.mxu0 %v589
    %636 = vmatpush1.msra.mxu0 %v588
    %637 = vmatprep.subr.mxu0 %v586
    %638 = vmatpush1.msra.mxu0 %v585
    %639 = vmatprep.subr.mxu0 0.0
    %640 = vmatpush2.msra.mxu0 0.0
    %641 = vmatprep.subr.mxu0 0.0
    %642 = vmatpush2.msra.mxu0 0.0
    %643 = vmatprep.subr.mxu0 0.0
    %644 = vmatpush2.msra.mxu0 0.0
    %645 = vmatprep.subr.mxu0 0.0
    %646 = vmatpush2.msra.mxu0 0.0
    %647 = vmatprep.subr.mxu0 0.0
    %648 = vmatpush2.msra.mxu0 0.0
    %649 = vmatprep.subr.mxu0 0.0
    %650 = vmatpush2.msra.mxu0 0.0
    %651 = vmatprep.subr.mxu0 0.0
    %652 = vmatpush2.msra.mxu0 0.0
    %653 = vmatprep.subr.mxu0 0.0
    %654 = vmatpush2.msra.mxu0 0.0
    %655 = vmatprep.subr.mxu0 0.0
    %656 = vmatpush2.msra.mxu0 0.0
    %657 = vmatprep.subr.mxu0 0.0
    %658 = vmatpush2.msra.mxu0 0.0
    %659 = vmatprep.subr.mxu0 0.0
    %660 = vmatpush2.msra.mxu0 0.0
    %661 = vmatprep.subr.mxu0 0.0
    %662 = vmatpush2.msra.mxu0 0.0
    %663 = vmatprep.subr.mxu0 0.0
    %664 = vmatpush2.msra.mxu0 0.0
    %665 = vmatprep.subr.mxu0 0.0
    %666 = vmatpush2.msra.mxu0 0.0
    %667 = vmatprep.subr.mxu0 0.0
    %668 = vmatpush2.msra.mxu0 0.0
    %669 = vmatprep.subr.mxu0 0.0
    %670 = vmatpush2.msra.mxu0 0.0
    %671 = vmatprep.mubr.f32.mxu0 0.0
    %672 = vmatmul.mubr.f32.gmra.mxu0 %v602
    %v673 = vpop.f32.mrf.mxu0
    %v674 = vadd.f32 %v595, %v673
    %v675 = vpop.f32.mrf.mxu0
    %v676 = vadd.f32 %v595, %v675
    %677 = vmatprep.mubr.f32.mxu0 0.0
    %678 = vmatmul.mubr.f32.gmra.mxu0 %v605
    %v679 = vpop.f32.mrf.mxu0
    %v680 = vadd.f32 %v599, %v679
    %v681 = vpop.f32.mrf.mxu0
    %v682 = vadd.f32 %v599, %v681
    %683 = vdwg.mxu0
    %684 = vmatprep.subr.mxu0 0.0
    %685 = vmatpush1.msra.mxu0 0.0
    %686 = vmatprep.subr.mxu0 0.0
    %687 = vmatpush1.msra.mxu0 0.0
    %688 = vmatprep.subr.mxu0 0.0
    %689 = vmatpush1.msra.mxu0 0.0
    %690 = vmatprep.subr.mxu0 0.0
    %691 = vmatpush1.msra.mxu0 0.0
    %692 = vmatprep.subr.mxu0 0.0
    %693 = vmatpush1.msra.mxu0 0.0
    %694 = vmatprep.subr.mxu0 0.0
    %695 = vmatpush1.msra.mxu0 0.0
    %696 = vmatprep.subr.mxu0 0.0
    %697 = vmatpush1.msra.mxu0 0.0
    %698 = vmatprep.subr.mxu0 0.0
    %699 = vmatpush1.msra.mxu0 0.0
    %700 = vmatprep.subr.mxu0 0.0
    %701 = vmatpush1.msra.mxu0 0.0
    %702 = vmatprep.subr.mxu0 0.0
    %703 = vmatpush1.msra.mxu0 0.0
    %704 = vmatprep.subr.mxu0 0.0
    %705 = vmatpush1.msra.mxu0 0.0
    %706 = vmatprep.subr.mxu0 0.0
    %707 = vmatpush1.msra.mxu0 0.0
    %708 = vmatprep.subr.mxu0 0.0
    %709 = vmatpush1.msra.mxu0 0.0
    %710 = vmatprep.subr.mxu0 0.0
    %711 = vmatpush1.msra.mxu0 0.0
    %712 = vmatprep.subr.mxu0 0.0
    %713 = vmatpush1.msra.mxu0 %v590
    %714 = vmatprep.subr.mxu0 0.0
    %715 = vmatpush1.msra.mxu0 %v587
    %716 = vmatprep.subr.mxu0 0.0
    %717 = vmatpush2.msra.mxu0 0.0
    %718 = vmatprep.subr.mxu0 0.0
    %719 = vmatpush2.msra.mxu0 0.0
    %720 = vmatprep.subr.mxu0 0.0
    %721 = vmatpush2.msra.mxu0 0.0
    %722 = vmatprep.subr.mxu0 0.0
    %723 = vmatpush2.msra.mxu0 0.0
    %724 = vmatprep.subr.mxu0 0.0
    %725 = vmatpush2.msra.mxu0 0.0
    %726 = vmatprep.subr.mxu0 0.0
    %727 = vmatpush2.msra.mxu0 0.0
    %728 = vmatprep.subr.mxu0 0.0
    %729 = vmatpush2.msra.mxu0 0.0
    %730 = vmatprep.subr.mxu0 0.0
    %731 = vmatpush2.msra.mxu0 0.0
    %732 = vmatprep.subr.mxu0 0.0
    %733 = vmatpush2.msra.mxu0 0.0
    %734 = vmatprep.subr.mxu0 0.0
    %735 = vmatpush2.msra.mxu0 0.0
    %736 = vmatprep.subr.mxu0 0.0
    %737 = vmatpush2.msra.mxu0 0.0
    %738 = vmatprep.subr.mxu0 0.0
    %739 = vmatpush2.msra.mxu0 0.0
    %740 = vmatprep.subr.mxu0 0.0
    %741 = vmatpush2.msra.mxu0 0.0
    %742 = vmatprep.subr.mxu0 0.0
    %743 = vmatpush2.msra.mxu0 0.0
    %744 = vmatprep.subr.mxu0 0.0
    %745 = vmatpush2.msra.mxu0 0.0
    %746 = vmatprep.subr.mxu0 0.0
    %747 = vmatpush2.msra.mxu0 0.0
    %748 = vmatprep.mubr.f32.mxu0 0.0
    %749 = vmatmul.mubr.f32.gmra.mxu0 %v602
    %v750 = vpop.f32.mrf.mxu0
    %v751 = vadd.f32 %v595, %v750
    %v752 = vpop.f32.mrf.mxu0
    %753 = vmatprep.mubr.f32.mxu0 0.0
    %754 = vmatmul.mubr.f32.gmra.mxu0 %v605
    %v755 = vpop.f32.mrf.mxu0
    %v756 = vadd.f32 %v599, %v755
    %v757 = vpop.f32.mrf.mxu0
    %758 = vdwg.mxu0
    %v759 = vmax.f32 %v674, 0.0
    %v760 = vmax.f32 %v676, 0.0
    %v761 = vmax.f32 %v751, 0.0
    %v762 = vmax.f32 %v680, 0.0
    %v763 = vmax.f32 %v682, 0.0
    %v764 = vmax.f32 %v756, 0.0
    %v765 = vld [vmem:[%s2 + $0x30] sm:$0xff]
    %v766 = vld [vmem:[%s2 + $0x38] sm:$0xff]
    %767 = vset.pattern.permute.xlu0 4
    %768 = vperm.xlu0 %767, %v47
    %v769 = vpop.permute.xlu0 %768
    %771 = vset.pattern.permute.xlu0 4
    %772 = vperm.xlu0 %771, %v48
    %v773 = vpop.permute.xlu0 %772
    %v776 = vsel %vm246, %v765, 0
    %v779 = vsel %vm246, %v766, 0
    %781 = vmatprep.subr.mxu0 0.0
    %782 = vmatpush1.msra.mxu0 0.0
    %783 = vmatprep.subr.mxu0 0.0
    %784 = vmatpush1.msra.mxu0 0.0
    %785 = vmatprep.subr.mxu0 0.0
    %786 = vmatpush1.msra.mxu0 0.0
    %787 = vmatprep.subr.mxu0 0.0
    %788 = vmatpush1.msra.mxu0 0.0
    %789 = vmatprep.subr.mxu0 0.0
    %790 = vmatpush1.msra.mxu0 0.0
    %791 = vmatprep.subr.mxu0 0.0
    %792 = vmatpush1.msra.mxu0 0.0
    %793 = vmatprep.subr.mxu0 0.0
    %794 = vmatpush1.msra.mxu0 0.0
    %795 = vmatprep.subr.mxu0 0.0
    %796 = vmatpush1.msra.mxu0 0.0
    %797 = vmatprep.subr.mxu0 0.0
    %798 = vmatpush1.msra.mxu0 0.0
    %799 = vmatprep.subr.mxu0 0.0
    %800 = vmatpush1.msra.mxu0 0.0
    %801 = vmatprep.subr.mxu0 0.0
    %802 = vmatpush1.msra.mxu0 0.0
    %803 = vmatprep.subr.mxu0 0.0
    %804 = vmatpush1.msra.mxu0 0.0
    %805 = vmatprep.subr.mxu0 0.0
    %806 = vmatpush1.msra.mxu0 0.0
    %807 = vmatprep.subr.mxu0 0.0
    %808 = vmatpush1.msra.mxu0 0.0
    %809 = vmatprep.subr.mxu0 %v763
    %810 = vmatpush1.msra.mxu0 %v762
    %811 = vmatprep.subr.mxu0 %v760
    %812 = vmatpush1.msra.mxu0 %v759
    %813 = vmatprep.subr.mxu0 0.0
    %814 = vmatpush2.msra.mxu0 0.0
    %815 = vmatprep.subr.mxu0 0.0
    %816 = vmatpush2.msra.mxu0 0.0
    %817 = vmatprep.subr.mxu0 0.0
    %818 = vmatpush2.msra.mxu0 0.0
    %819 = vmatprep.subr.mxu0 0.0
    %820 = vmatpush2.msra.mxu0 0.0
    %821 = vmatprep.subr.mxu0 0.0
    %822 = vmatpush2.msra.mxu0 0.0
    %823 = vmatprep.subr.mxu0 0.0
    %824 = vmatpush2.msra.mxu0 0.0
    %825 = vmatprep.subr.mxu0 0.0
    %826 = vmatpush2.msra.mxu0 0.0
    %827 = vmatprep.subr.mxu0 0.0
    %828 = vmatpush2.msra.mxu0 0.0
    %829 = vmatprep.subr.mxu0 0.0
    %830 = vmatpush2.msra.mxu0 0.0
    %831 = vmatprep.subr.mxu0 0.0
    %832 = vmatpush2.msra.mxu0 0.0
    %833 = vmatprep.subr.mxu0 0.0
    %834 = vmatpush2.msra.mxu0 0.0
    %835 = vmatprep.subr.mxu0 0.0
    %836 = vmatpush2.msra.mxu0 0.0
    %837 = vmatprep.subr.mxu0 0.0
    %838 = vmatpush2.msra.mxu0 0.0
    %839 = vmatprep.subr.mxu0 0.0
    %840 = vmatpush2.msra.mxu0 0.0
    %841 = vmatprep.subr.mxu0 0.0
    %842 = vmatpush2.msra.mxu0 0.0
    %843 = vmatprep.subr.mxu0 0.0
    %844 = vmatpush2.msra.mxu0 0.0
    %845 = vmatprep.mubr.f32.mxu0 0.0
    %846 = vmatmul.mubr.f32.gmra.mxu0 %v776
    %v847 = vpop.f32.mrf.mxu0
    %v848 = vadd.f32 %v769, %v847
    %v849 = vpop.f32.mrf.mxu0
    %v850 = vadd.f32 %v769, %v849
    %851 = vmatprep.mubr.f32.mxu0 0.0
    %852 = vmatmul.mubr.f32.gmra.mxu0 %v779
    %v853 = vpop.f32.mrf.mxu0
    %v854 = vadd.f32 %v773, %v853
    %v855 = vpop.f32.mrf.mxu0
    %v856 = vadd.f32 %v773, %v855
    %857 = vdwg.mxu0
    %858 = vmatprep.subr.mxu0 0.0
    %859 = vmatpush1.msra.mxu0 0.0
    %860 = vmatprep.subr.mxu0 0.0
    %861 = vmatpush1.msra.mxu0 0.0
    %862 = vmatprep.subr.mxu0 0.0
    %863 = vmatpush1.msra.mxu0 0.0
    %864 = vmatprep.subr.mxu0 0.0
    %865 = vmatpush1.msra.mxu0 0.0
    %866 = vmatprep.subr.mxu0 0.0
    %867 = vmatpush1.msra.mxu0 0.0
    %868 = vmatprep.subr.mxu0 0.0
    %869 = vmatpush1.msra.mxu0 0.0
    %870 = vmatprep.subr.mxu0 0.0
    %871 = vmatpush1.msra.mxu0 0.0
    %872 = vmatprep.subr.mxu0 0.0
    %873 = vmatpush1.msra.mxu0 0.0
    %874 = vmatprep.subr.mxu0 0.0
    %875 = vmatpush1.msra.mxu0 0.0
    %876 = vmatprep.subr.mxu0 0.0
    %877 = vmatpush1.msra.mxu0 0.0
    %878 = vmatprep.subr.mxu0 0.0
    %879 = vmatpush1.msra.mxu0 0.0
    %880 = vmatprep.subr.mxu0 0.0
    %881 = vmatpush1.msra.mxu0 0.0
    %882 = vmatprep.subr.mxu0 0.0
    %883 = vmatpush1.msra.mxu0 0.0
    %884 = vmatprep.subr.mxu0 0.0
    %885 = vmatpush1.msra.mxu0 0.0
    %886 = vmatprep.subr.mxu0 0.0
    %887 = vmatpush1.msra.mxu0 %v764
    %888 = vmatprep.subr.mxu0 0.0
    %889 = vmatpush1.msra.mxu0 %v761
    %890 = vmatprep.subr.mxu0 0.0
    %891 = vmatpush2.msra.mxu0 0.0
    %892 = vmatprep.subr.mxu0 0.0
    %893 = vmatpush2.msra.mxu0 0.0
    %894 = vmatprep.subr.mxu0 0.0
    %895 = vmatpush2.msra.mxu0 0.0
    %896 = vmatprep.subr.mxu0 0.0
    %897 = vmatpush2.msra.mxu0 0.0
    %898 = vmatprep.subr.mxu0 0.0
    %899 = vmatpush2.msra.mxu0 0.0
    %900 = vmatprep.subr.mxu0 0.0
    %901 = vmatpush2.msra.mxu0 0.0
    %902 = vmatprep.subr.mxu0 0.0
    %903 = vmatpush2.msra.mxu0 0.0
    %904 = vmatprep.subr.mxu0 0.0
    %905 = vmatpush2.msra.mxu0 0.0
    %906 = vmatprep.subr.mxu0 0.0
    %907 = vmatpush2.msra.mxu0 0.0
    %908 = vmatprep.subr.mxu0 0.0
    %909 = vmatpush2.msra.mxu0 0.0
    %910 = vmatprep.subr.mxu0 0.0
    %911 = vmatpush2.msra.mxu0 0.0
    %912 = vmatprep.subr.mxu0 0.0
    %913 = vmatpush2.msra.mxu0 0.0
    %914 = vmatprep.subr.mxu0 0.0
    %915 = vmatpush2.msra.mxu0 0.0
    %916 = vmatprep.subr.mxu0 0.0
    %917 = vmatpush2.msra.mxu0 0.0
    %918 = vmatprep.subr.mxu0 0.0
    %919 = vmatpush2.msra.mxu0 0.0
    %920 = vmatprep.subr.mxu0 0.0
    %921 = vmatpush2.msra.mxu0 0.0
    %922 = vmatprep.mubr.f32.mxu0 0.0
    %923 = vmatmul.mubr.f32.gmra.mxu0 %v776
    %v924 = vpop.f32.mrf.mxu0
    %v925 = vadd.f32 %v769, %v924
    %v926 = vpop.f32.mrf.mxu0
    %927 = vmatprep.mubr.f32.mxu0 0.0
    %928 = vmatmul.mubr.f32.gmra.mxu0 %v779
    %v929 = vpop.f32.mrf.mxu0
    %v930 = vadd.f32 %v773, %v929
    %v931 = vpop.f32.mrf.mxu0
    %932 = vdwg.mxu0
    %v933 = vadd.f32 %v585, %v848
    %v934 = vadd.f32 %v586, %v850
    %v935 = vadd.f32 %v587, %v925
    %v936 = vadd.f32 %v588, %v854
    %v937 = vadd.f32 %v589, %v856
    %v938 = vadd.f32 %v590, %v930
    %v939 = vmax.f32 %v933, 0.0
    %v940 = vmax.f32 %v934, 0.0
    %v941 = vmax.f32 %v935, 0.0
    %v942 = vmax.f32 %v936, 0.0
    %v943 = vmax.f32 %v937, 0.0
    %v944 = vmax.f32 %v938, 0.0
    %v945 = vld [vmem:[%s3] sm:$0x1]
    %946 = vset.pattern.permute.xlu0 5
    %947 = vperm.xlu0 %946, %v47
    %v948 = vpop.permute.xlu0 %947
    %v951 = vsel %vm246, %v945, 0
    %953 = vmatprep.subr.mxu0 0.0
    %954 = vmatpush1.msra.mxu0 0.0
    %955 = vmatprep.subr.mxu0 0.0
    %956 = vmatpush1.msra.mxu0 0.0
    %957 = vmatprep.subr.mxu0 0.0
    %958 = vmatpush1.msra.mxu0 0.0
    %959 = vmatprep.subr.mxu0 0.0
    %960 = vmatpush1.msra.mxu0 0.0
    %961 = vmatprep.subr.mxu0 0.0
    %962 = vmatpush1.msra.mxu0 0.0
    %963 = vmatprep.subr.mxu0 0.0
    %964 = vmatpush1.msra.mxu0 0.0
    %965 = vmatprep.subr.mxu0 0.0
    %966 = vmatpush1.msra.mxu0 0.0
    %967 = vmatprep.subr.mxu0 0.0
    %968 = vmatpush1.msra.mxu0 0.0
    %969 = vmatprep.subr.mxu0 0.0
    %970 = vmatpush1.msra.mxu0 0.0
    %971 = vmatprep.subr.mxu0 0.0
    %972 = vmatpush1.msra.mxu0 0.0
    %973 = vmatprep.subr.mxu0 0.0
    %974 = vmatpush1.msra.mxu0 0.0
    %975 = vmatprep.subr.mxu0 0.0
    %976 = vmatpush1.msra.mxu0 0.0
    %977 = vmatprep.subr.mxu0 0.0
    %978 = vmatpush1.msra.mxu0 0.0
    %979 = vmatprep.subr.mxu0 0.0
    %980 = vmatpush1.msra.mxu0 0.0
    %981 = vmatprep.subr.mxu0 %v943
    %982 = vmatpush1.msra.mxu0 %v942
    %983 = vmatprep.subr.mxu0 %v940
    %984 = vmatpush1.msra.mxu0 %v939
    %985 = vmatprep.subr.mxu0 0.0
    %986 = vmatpush2.msra.mxu0 0.0
    %987 = vmatprep.subr.mxu0 0.0
    %988 = vmatpush2.msra.mxu0 0.0
    %989 = vmatprep.subr.mxu0 0.0
    %990 = vmatpush2.msra.mxu0 0.0
    %991 = vmatprep.subr.mxu0 0.0
    %992 = vmatpush2.msra.mxu0 0.0
    %993 = vmatprep.subr.mxu0 0.0
    %994 = vmatpush2.msra.mxu0 0.0
    %995 = vmatprep.subr.mxu0 0.0
    %996 = vmatpush2.msra.mxu0 0.0
    %997 = vmatprep.subr.mxu0 0.0
    %998 = vmatpush2.msra.mxu0 0.0
    %999 = vmatprep.subr.mxu0 0.0
    %1000 = vmatpush2.msra.mxu0 0.0
    %1001 = vmatprep.subr.mxu0 0.0
    %1002 = vmatpush2.msra.mxu0 0.0
    %1003 = vmatprep.subr.mxu0 0.0
    %1004 = vmatpush2.msra.mxu0 0.0
    %1005 = vmatprep.subr.mxu0 0.0
    %1006 = vmatpush2.msra.mxu0 0.0
    %1007 = vmatprep.subr.mxu0 0.0
    %1008 = vmatpush2.msra.mxu0 0.0
    %1009 = vmatprep.subr.mxu0 0.0
    %1010 = vmatpush2.msra.mxu0 0.0
    %1011 = vmatprep.subr.mxu0 0.0
    %1012 = vmatpush2.msra.mxu0 0.0
    %1013 = vmatprep.subr.mxu0 0.0
    %1014 = vmatpush2.msra.mxu0 0.0
    %1015 = vmatprep.subr.mxu0 0.0
    %1016 = vmatpush2.msra.mxu0 0.0
    %1017 = vmatprep.mubr.f32.mxu0 0.0
    %1018 = vmatmul.mubr.f32.gmra.mxu0 %v951
    %v1019 = vpop.f32.mrf.mxu0
    %v1020 = vadd.f32 %v948, %v1019
    %v1021 = vpop.f32.mrf.mxu0
    %v1022 = vadd.f32 %v948, %v1021
    %1023 = vdwg.mxu0
    %1024 = vmatprep.subr.mxu0 0.0
    %1025 = vmatpush1.msra.mxu0 0.0
    %1026 = vmatprep.subr.mxu0 0.0
    %1027 = vmatpush1.msra.mxu0 0.0
    %1028 = vmatprep.subr.mxu0 0.0
    %1029 = vmatpush1.msra.mxu0 0.0
    %1030 = vmatprep.subr.mxu0 0.0
    %1031 = vmatpush1.msra.mxu0 0.0
    %1032 = vmatprep.subr.mxu0 0.0
    %1033 = vmatpush1.msra.mxu0 0.0
    %1034 = vmatprep.subr.mxu0 0.0
    %1035 = vmatpush1.msra.mxu0 0.0
    %1036 = vmatprep.subr.mxu0 0.0
    %1037 = vmatpush1.msra.mxu0 0.0
    %1038 = vmatprep.subr.mxu0 0.0
    %1039 = vmatpush1.msra.mxu0 0.0
    %1040 = vmatprep.subr.mxu0 0.0
    %1041 = vmatpush1.msra.mxu0 0.0
    %1042 = vmatprep.subr.mxu0 0.0
    %1043 = vmatpush1.msra.mxu0 0.0
    %1044 = vmatprep.subr.mxu0 0.0
    %1045 = vmatpush1.msra.mxu0 0.0
    %1046 = vmatprep.subr.mxu0 0.0
    %1047 = vmatpush1.msra.mxu0 0.0
    %1048 = vmatprep.subr.mxu0 0.0
    %1049 = vmatpush1.msra.mxu0 0.0
    %1050 = vmatprep.subr.mxu0 0.0
    %1051 = vmatpush1.msra.mxu0 0.0
    %1052 = vmatprep.subr.mxu0 0.0
    %1053 = vmatpush1.msra.mxu0 %v944
    %1054 = vmatprep.subr.mxu0 0.0
    %1055 = vmatpush1.msra.mxu0 %v941
    %1056 = vmatprep.subr.mxu0 0.0
    %1057 = vmatpush2.msra.mxu0 0.0
    %1058 = vmatprep.subr.mxu0 0.0
    %1059 = vmatpush2.msra.mxu0 0.0
    %1060 = vmatprep.subr.mxu0 0.0
    %1061 = vmatpush2.msra.mxu0 0.0
    %1062 = vmatprep.subr.mxu0 0.0
    %1063 = vmatpush2.msra.mxu0 0.0
    %1064 = vmatprep.subr.mxu0 0.0
    %1065 = vmatpush2.msra.mxu0 0.0
    %1066 = vmatprep.subr.mxu0 0.0
    %1067 = vmatpush2.msra.mxu0 0.0
    %1068 = vmatprep.subr.mxu0 0.0
    %1069 = vmatpush2.msra.mxu0 0.0
    %1070 = vmatprep.subr.mxu0 0.0
    %1071 = vmatpush2.msra.mxu0 0.0
    %1072 = vmatprep.subr.mxu0 0.0
    %1073 = vmatpush2.msra.mxu0 0.0
    %1074 = vmatprep.subr.mxu0 0.0
    %1075 = vmatpush2.msra.mxu0 0.0
    %1076 = vmatprep.subr.mxu0 0.0
    %1077 = vmatpush2.msra.mxu0 0.0
    %1078 = vmatprep.subr.mxu0 0.0
    %1079 = vmatpush2.msra.mxu0 0.0
    %1080 = vmatprep.subr.mxu0 0.0
    %1081 = vmatpush2.msra.mxu0 0.0
    %1082 = vmatprep.subr.mxu0 0.0
    %1083 = vmatpush2.msra.mxu0 0.0
    %1084 = vmatprep.subr.mxu0 0.0
    %1085 = vmatpush2.msra.mxu0 0.0
    %1086 = vmatprep.subr.mxu0 0.0
    %1087 = vmatpush2.msra.mxu0 0.0
    %1088 = vmatprep.mubr.f32.mxu0 0.0
    %1089 = vmatmul.mubr.f32.gmra.mxu0 %v951
    %v1090 = vpop.f32.mrf.mxu0
    %v1091 = vadd.f32 %v948, %v1090
    %v1092 = vpop.f32.mrf.mxu0
    %1093 = vdwg.mxu0
    %v1094 = vand.u32 2147483647, %v1020
    %v1095 = vand.u32 2147483647, %v1022
    %v1096 = vand.u32 2147483647, %v1091
    %v1097 = vsub.f32 0.0, %v1094
    %v1098 = vsub.f32 0.0, %v1095
    %v1099 = vsub.f32 0.0, %v1096
    %v1100 = vmul.f32 %v1097, 1.442695
    %v1101 = vpow.pop %v1100
    %v1102 = vmul.f32 %v1098, 1.442695
    %v1103 = vpow.pop %v1102
    %v1104 = vmul.f32 %v1099, 1.442695
    %v1105 = vpow.pop %v1104
    %vm1106 = vcmp.ge.f32.partialorder %v1020, 0.0
    %vm1107 = vcmp.ge.f32.partialorder %v1022, 0.0
    %vm1108 = vcmp.ge.f32.partialorder %v1091, 0.0
    %v1109 = vsel %vm1106, 1.0, %v1101
    %v1110 = vsel %vm1107, 1.0, %v1103
    %v1111 = vsel %vm1108, 1.0, %v1105
    %v1112 = vadd.f32 %v1101, 1.0
    %v1113 = vadd.f32 %v1103, 1.0
    %v1114 = vadd.f32 %v1105, 1.0
    %v1115 = vrcp.pop %v1112
    %v1116 = vmul.f32 %v1109, %v1115
    %v1117 = vrcp.pop %v1113
    %v1118 = vmul.f32 %v1110, %v1117
    %v1119 = vrcp.pop %v1114
    %v1120 = vmul.f32 %v1111, %v1119
    %v1124 = vcombine.low %v1116, %v1118
    %v1126 = vunpack.c.l.s4 1966171168
    %v1127 = vunpack.c.0.s8 %v1126
    %v1128 = vlaneseq
    %v1129 = vshrl.u32 %v1128, 7
    %v1130 = vsub.s32 %v1127, %v1129
    %v1131 = vrot.slane %v1124, %v1130
    %v1133 = vunpack.c.l.s4 1966171168
    %v1134 = vunpack.c.0.s8 %v1133
    %v1135 = vlaneseq
    %v1136 = vshrl.u32 %v1135, 7
    %v1137 = vsub.s32 %v1134, %v1136
    %v1138 = vrot.slane %v1120, %v1137
    %v1139 = vcombine.low %v1131, %v1138
    %v1141 = vunpack.c.l.s4 1966171168
    %v1142 = vunpack.c.0.s8 %v1141
    %v1143 = vlaneseq
    %v1144 = vshrl.u32 %v1143, 7
    %v1145 = vsub.s32 %v1142, %v1144
    %v1146 = vrot.slane %v1139, %v1145
    %v1148 = vlaneseq
    %vm1149 = vcmp.ge.s32.totalorder %v1148, 0
    %vm1150 = vcmp.lt.s32.totalorder %v1148, 384
    %vm1151 = vmand %vm1149, %vm1150
    %1152 = vst.msk [vmem:[#allocation5] sm:$0x7] %vm1151, %v1146
    // Predicated region
    $region26: #{tpu_custom_call.1} parent=1 // pred_check
      _
    $region27: #{tpu_custom_call.1} parent=1 // pred_check_branch
      %1154 = sbr.rel (0) target = $region29
    $region28: #{tpu_custom_call.1} parent=1 // pred_region
      %s1156 = ssub.s32 48, 48
      %1157 = vsyncadd [#allocation4], %s1156
      %s1159 = sshll.u32 [#allocation5], 4
      %s1160 = int_to_ptr.vmem [resolvable:$true] %s1159
      %1162 = dma.vmem_to_hbm [thread:$0]  %s1160, 48, %s5, [#allocation4]
    $region29: #{tpu_custom_call.1} parent=1 // pred_fallthru
      _
    // Predicated region
    $region30: #{tpu_custom_call.1} parent=1 // pred_check
      _
    $region31: #{tpu_custom_call.1} parent=1 // pred_check_branch
      %1164 = sbr.rel (0) target = $region33
    $region32: #{tpu_custom_call.1} parent=1 // pred_region
      %1165 = dma.done [#allocation4], 48
    $region33: #{tpu_custom_call.1} parent=1 // pred_fallthru
      _
    %1166 = vsyncpa [#allocation3], 1
    %1167 = vsyncpa [#allocation4], 1

</llo_original>
